<compile_context>
chip_gen: v7x
topology: tpu7x:2x2x1
jax: 0.10.0
libtpu: 0.0.40
codegen_flags: <defaults>
</compile_context>

<pallas_src>
import functools
import math

import jax
import jax.numpy as jnp
from jax.experimental import pallas as pl
from jax.experimental.pallas import tpu as pltpu


# ----------------------------------------------------------------------------
# helpers
# ----------------------------------------------------------------------------
def _round_up(x, m):
    return ((x + m - 1) // m) * m


def _pick_tile(n, cap):
    """Largest multiple of 128 <= cap that divides n (n is a multiple of 128)."""
    t = min(n, cap)
    while n % t:
        t -= 128
    return t


def _pad2(x, rows, cols):
    return jnp.pad(x, ((0, rows - x.shape[0]), (0, cols - x.shape[1])))


# ----------------------------------------------------------------------------
# Phase 1: agg = A @ [x | h]; z/r gates; r*h
# ----------------------------------------------------------------------------
def _phase1_kernel(a_ref, xh_ref, h_ref, wzr_ref, bzr_ref,
                   xa_ref, z_ref, rh_ref, acc_ref, *, f_pad, h_pad):
    k = pl.program_id(1)

    @pl.when(k == 0)
    def _init():
        acc_ref[...] = jnp.zeros_like(acc_ref)

    # streamed K-reduction over source nodes: agg_tile += A_tile @ [x|h]_tile
    acc_ref[...] += jnp.dot(a_ref[...], xh_ref[...],
                            preferred_element_type=jnp.float32)

    @pl.when(k == pl.num_programs(1) - 1)
    def _finalize():
        agg = acc_ref[...]                                   # (tm, f_pad+h_pad)
        # packed gate matmul: [xa|ha] @ [[Wxz|Wxr];[Whz|Whr]] + (bx+bh)
        zr = jnp.dot(agg, wzr_ref[...],
                     preferred_element_type=jnp.float32) + bzr_ref[...]
        z = jax.nn.sigmoid(zr[:, :h_pad])
        r = jax.nn.sigmoid(zr[:, h_pad:])
        xa_ref[...] = agg[:, :f_pad]
        z_ref[...] = z
        rh_ref[...] = r * h_ref[...]


def _phase1(a_p, xh_p, h_p, wzr, bzr, f_pad, h_pad, tm, tk):
    np_ = a_p.shape[0]
    fh = f_pad + h_pad
    grid = (np_ // tm, np_ // tk)
    kernel = functools.partial(_phase1_kernel, f_pad=f_pad, h_pad=h_pad)
    return pl.pallas_call(
        kernel,
        out_shape=(
            jax.ShapeDtypeStruct((np_, f_pad), jnp.float32),   # xa = A @ x
            jax.ShapeDtypeStruct((np_, h_pad), jnp.float32),   # z gate
            jax.ShapeDtypeStruct((np_, h_pad), jnp.float32),   # r * h
        ),
        grid_spec=pltpu.PrefetchScalarGridSpec(
            num_scalar_prefetch=0,
            grid=grid,
            in_specs=[
                pl.BlockSpec((tm, tk), lambda i, k: (i, k)),          # A tile
                pl.BlockSpec((tk, fh), lambda i, k: (k, 0)),          # [x|h] tile
                pl.BlockSpec((tm, h_pad), lambda i, k: (i, 0)),       # h tile
                pl.BlockSpec((fh, 2 * h_pad), lambda i, k: (0, 0)),   # packed W
                pl.BlockSpec((1, 2 * h_pad), lambda i, k: (0, 0)),    # packed b
            ],
            out_specs=[
                pl.BlockSpec((tm, f_pad), lambda i, k: (i, 0)),
                pl.BlockSpec((tm, h_pad), lambda i, k: (i, 0)),
                pl.BlockSpec((tm, h_pad), lambda i, k: (i, 0)),
            ],
            scratch_shapes=[pltpu.VMEM((tm, fh), jnp.float32)],
        ),
        compiler_params=pltpu.CompilerParams(
            dimension_semantics=("parallel", "arbitrary")),
    )(a_p, xh_p, h_p, wzr, bzr)


# ----------------------------------------------------------------------------
# Phase 2: hagg = A @ (r*h); h_tilde; h_out
# ----------------------------------------------------------------------------
def _phase2_kernel(a_ref, rh_ref, xa_ref, z_ref, h_ref,
                   wxh_ref, whh_ref, bh_ref,
                   hout_ref, acc_ref):
    k = pl.program_id(1)

    @pl.when(k == 0)
    def _init():
        acc_ref[...] = jnp.zeros_like(acc_ref)

    acc_ref[...] += jnp.dot(a_ref[...], rh_ref[...],
                            preferred_element_type=jnp.float32)

    @pl.when(k == pl.num_programs(1) - 1)
    def _finalize():
        h_tilde = jnp.tanh(
            jnp.dot(xa_ref[...], wxh_ref[...],
                    preferred_element_type=jnp.float32)
            + jnp.dot(acc_ref[...], whh_ref[...],
                      preferred_element_type=jnp.float32)
            + bh_ref[...])
        z = z_ref[...]
        hout_ref[...] = z * h_ref[...] + (1.0 - z) * h_tilde


def _phase2(a_p, rh_p, xa_p, z_p, h_p, wxh, whh, bh, f_pad, h_pad, tm, tk):
    np_ = a_p.shape[0]
    grid = (np_ // tm, np_ // tk)
    return pl.pallas_call(
        _phase2_kernel,
        out_shape=jax.ShapeDtypeStruct((np_, h_pad), jnp.float32),
        grid_spec=pltpu.PrefetchScalarGridSpec(
            num_scalar_prefetch=0,
            grid=grid,
            in_specs=[
                pl.BlockSpec((tm, tk), lambda i, k: (i, k)),          # A tile
                pl.BlockSpec((tk, h_pad), lambda i, k: (k, 0)),       # r*h tile
                pl.BlockSpec((tm, f_pad), lambda i, k: (i, 0)),       # xa tile
                pl.BlockSpec((tm, h_pad), lambda i, k: (i, 0)),       # z tile
                pl.BlockSpec((tm, h_pad), lambda i, k: (i, 0)),       # h tile
                pl.BlockSpec((f_pad, h_pad), lambda i, k: (0, 0)),    # Wxh
                pl.BlockSpec((h_pad, h_pad), lambda i, k: (0, 0)),    # Whh
                pl.BlockSpec((1, h_pad), lambda i, k: (0, 0)),        # bxh+bhh
            ],
            out_specs=pl.BlockSpec((tm, h_pad), lambda i, k: (i, 0)),
            scratch_shapes=[pltpu.VMEM((tm, h_pad), jnp.float32)],
        ),
        compiler_params=pltpu.CompilerParams(
            dimension_semantics=("parallel", "arbitrary")),
    )(a_p, rh_p, xa_p, z_p, h_p, wxh, whh, bh)


# ----------------------------------------------------------------------------
# Parameter init (matches SAGEConv.reset_parameters) + packing
# ----------------------------------------------------------------------------
def init_params(key, input_size, hidden_size, n_layer):
    """U(-1/sqrt(in), 1/sqrt(in)) for W and b, like the PyTorch module."""
    params = []
    names = ["xz", "hz", "xr", "hr", "xh", "hh"]
    for i in range(n_layer):
        layer = {}
        for name in names:
            in_c = input_size if (i == 0 and name[0] == "x") else hidden_size
            stdv = 1.0 / math.sqrt(in_c)
            key, kw, kb = jax.random.split(key, 3)
            layer["w" + name] = jax.random.uniform(
                kw, (in_c, hidden_size), jnp.float32, -stdv, stdv)
            layer["b" + name] = jax.random.uniform(
                kb, (1, hidden_size), jnp.float32, -stdv, stdv)
        params.append(layer)
    return params


def _pack_layer_params(p, f_in, hidden, f_pad, h_pad):
    """Pack + lane-pad gate weights.  Biases move after aggregation (exact
    because A is row-stochastic), so bx and bh simply add."""
    wzr = jnp.zeros((f_pad + h_pad, 2 * h_pad), jnp.float32)
    wzr = wzr.at[:f_in, :hidden].set(p["wxz"])
    wzr = wzr.at[:f_in, h_pad:h_pad + hidden].set(p["wxr"])
    wzr = wzr.at[f_pad:f_pad + hidden, :hidden].set(p["whz"])
    wzr = wzr.at[f_pad:f_pad + hidden, h_pad:h_pad + hidden].set(p["whr"])
    bzr = jnp.zeros((1, 2 * h_pad), jnp.float32)
    bzr = bzr.at[:, :hidden].set(p["bxz"] + p["bhz"])
    bzr = bzr.at[:, h_pad:h_pad + hidden].set(p["bxr"] + p["bhr"])
    wxh = _pad2(p["wxh"], f_pad, h_pad)
    whh = _pad2(p["whh"], h_pad, h_pad)
    bh = _pad2(p["bxh"] + p["bhh"], 1, h_pad)
    return dict(wzr=wzr, bzr=bzr, wxh=wxh, whh=whh, bh=bh)


# ----------------------------------------------------------------------------
# Graph preprocessing + multi-layer forward
# ----------------------------------------------------------------------------
def build_norm_adj(edge_index, num_nodes):
    """Dense row-normalized adjacency equivalent to:
       remove_self_loops -> add_self_loops -> scatter_mean(out[col], row)."""
    row, col = edge_index  # row = destination, col = source
    keep = row != col
    row, col = row[keep], col[keep]
    a = jnp.zeros((num_nodes, num_nodes), jnp.float32)
    a = a.at[row, col].add(1.0)
    a = a + jnp.eye(num_nodes, dtype=jnp.float32)   # add self loops
    deg = jnp.sum(a, axis=1, keepdims=True)         # >= 1 thanks to self loop
    return a / deg                                  # mean aggregation


def graph_gru_sage_forward(inp, a_norm, h, params, *, mxu_dtype=jnp.float32):
    """inp: (N, F_in); h: (n_layer, N, H); returns (out, h_out) like PyTorch."""
    n_layer, n, hidden = h.shape
    f_in0 = inp.shape[1]

    np_ = _round_up(n, 128)          # lane-pad node dim (A last dim, K tiles)
    h_pad = _round_up(hidden, 128)   # lane-pad hidden dim
    tm = _pick_tile(np_, 256)        # destination-row tile (parallel axis)
    tk = _pick_tile(np_, 512)        # source-node tile    (reduction axis)

    a_p = _pad2(a_norm, np_, np_).astype(mxu_dtype)

    h_outs = []
    x_p = None
    for i in range(n_layer):
        f_in = f_in0 if i == 0 else hidden
        f_pad = _round_up(f_in, 128)
        if i == 0:
            x_p = _pad2(inp, np_, f_pad)
        # else: x_p is the previous layer's padded output, f_pad == h_pad
        h_p = _pad2(h[i], np_, h_pad)
        packed = _pack_layer_params(params[i], f_in, hidden, f_pad, h_pad)

        xh_p = jnp.concatenate([x_p, h_p], axis=1).astype(mxu_dtype)
        xa, z, rh = _phase1(a_p, xh_p, h_p, packed["wzr"], packed["bzr"],
                            f_pad, h_pad, tm, tk)
        hout_p = _phase2(a_p, rh.astype(mxu_dtype), xa, z, h_p,
                         packed["wxh"], packed["whh"], packed["bh"],
                         f_pad, h_pad, tm, tk)

        h_outs.append(hout_p[:n, :hidden])
        x_p = hout_p  # padded columns of hout are exactly zero -> safe reuse
    h_out = jnp.stack(h_outs, axis=0)
    return h_out, h_out


# ----------------------------------------------------------------------------
# pure-JAX reference (faithful to the PyTorch formulation)
# ----------------------------------------------------------------------------
def _reference_forward(inp, a_norm, h, params):
    def sage(x, w, b):
        return a_norm @ (x @ w + b)

    n_layer = h.shape[0]
    outs = []
    for i in range(n_layer):
        p = params[i]
        x = inp if i == 0 else outs[i - 1]
        z = jax.nn.sigmoid(sage(x, p["wxz"], p["bxz"]) + sage(h[i], p["whz"], p["bhz"]))
        r = jax.nn.sigmoid(sage(x, p["wxr"], p["bxr"]) + sage(h[i], p["whr"], p["bhr"]))
        ht = jnp.tanh(sage(x, p["wxh"], p["bxh"]) + sage(r * h[i], p["whh"], p["bhh"]))
        outs.append(z * h[i] + (1.0 - z) * ht)
    return jnp.stack(outs, axis=0)


if __name__ == "__main__":
    # small deterministic problem
    num_nodes = 16
    input_size = 8
    hidden_size = 32
    n_layer = 2

    key = jax.random.PRNGKey(0)
    key, k_x, k_h, k_p = jax.random.split(key, 4)

    inp = jax.random.normal(k_x, (num_nodes, input_size), jnp.float32)
    h0 = jax.random.normal(k_h, (n_layer, num_nodes, hidden_size), jnp.float32)
    params = init_params(k_p, input_size, hidden_size, n_layer)

    # deterministic edge list (ring + skip connections), row = dst, col = src
    src = jnp.arange(num_nodes, dtype=jnp.int32)
    dst1 = (src + 1) % num_nodes
    dst2 = (src + 3) % num_nodes
    edge_index = jnp.stack(
        [jnp.concatenate([dst1, dst2]), jnp.concatenate([src, src])], axis=0
    )
    a_norm = build_norm_adj(edge_index, num_nodes)

    out, h_out = graph_gru_sage_forward(inp, a_norm, h0, params)
    jax.block_until_ready(h_out)

    ref = _reference_forward(inp, a_norm, h0, params)
    assert out.shape == (n_layer, num_nodes, hidden_size)
    assert jnp.allclose(h_out, ref, atol=1e-4, rtol=1e-4), (
        float(jnp.max(jnp.abs(h_out - ref))))
    print("KERNEL_OK")
</pallas_src>

<mosaic_0001>
module attributes {stable_mosaic.version = 11 : i64} {
  func.func @_phase1_kernel(%arg0: i32, %arg1: i32, %arg2: memref<128x128xf32, #tpu.memory_space<vmem>>, %arg3: memref<128x256xf32, #tpu.memory_space<vmem>>, %arg4: memref<128x128xf32, #tpu.memory_space<vmem>>, %arg5: memref<256x256xf32, #tpu.memory_space<vmem>>, %arg6: memref<1x256xf32, #tpu.memory_space<vmem>>, %arg7: memref<128x128xf32, #tpu.memory_space<vmem>>, %arg8: memref<128x128xf32, #tpu.memory_space<vmem>>, %arg9: memref<128x128xf32, #tpu.memory_space<vmem>>, %arg10: memref<128x256xf32, #tpu.memory_space<vmem>>) attributes {dimension_semantics = [#tpu.dimension_semantics<parallel>, #tpu.dimension_semantics<arbitrary>], iteration_bounds = array<i64: 1, 1>, scalar_prefetch = 0 : i64, scratch_operands = 1 : i64, tpu.core_type = #tpu.core_type<tc>, window_params = [{transform_indices = @transform_0, window_bounds = array<i64: 128, 128>}, {transform_indices = @transform_1, window_bounds = array<i64: 128, 256>}, {transform_indices = @transform_2, window_bounds = array<i64: 128, 128>}, {pipeline_mode = #tpu.pipeline_mode<synchronous>, transform_indices = @transform_3, window_bounds = array<i64: 256, 256>}, {pipeline_mode = #tpu.pipeline_mode<synchronous>, transform_indices = @transform_4, window_bounds = array<i64: 1, 256>}, {transform_indices = @transform_5, window_bounds = array<i64: 128, 128>}, {transform_indices = @transform_6, window_bounds = array<i64: 128, 128>}, {transform_indices = @transform_7, window_bounds = array<i64: 128, 128>}]} {
    %c0_i32 = arith.constant 0 : i32
    %0 = arith.cmpi eq, %arg1, %c0_i32 : i32
    %1 = arith.extui %0 : i1 to i32
    %c0_i32_0 = arith.constant 0 : i32
    %2 = arith.cmpi ne, %1, %c0_i32_0 : i32
    scf.if %2 {
      %cst_10 = arith.constant 0.000000e+00 : f32
      %12 = vector.broadcast %cst_10 : f32 to vector<128x256xf32>
      %c0_11 = arith.constant 0 : index
      %c0_12 = arith.constant 0 : index
      %13 = vector.load %arg10[%c0_11, %c0_12] : memref<128x256xf32, #tpu.memory_space<vmem>>, vector<128x256xf32>
      tpu.vector_store %arg10[%c0_11, %c0_12], %12 {strides = array<i32>} : memref<128x256xf32, #tpu.memory_space<vmem>>, vector<128x256xf32>,
    } else {
    }
    %c0 = arith.constant 0 : index
    %c0_1 = arith.constant 0 : index
    %3 = vector.load %arg10[%c0, %c0_1] : memref<128x256xf32, #tpu.memory_space<vmem>>, vector<128x256xf32>
    %c0_2 = arith.constant 0 : index
    %c0_3 = arith.constant 0 : index
    %4 = vector.load %arg2[%c0_2, %c0_3] : memref<128x128xf32, #tpu.memory_space<vmem>>, vector<128x128xf32>
    %c0_4 = arith.constant 0 : index
    %c0_5 = arith.constant 0 : index
    %5 = vector.load %arg3[%c0_4, %c0_5] : memref<128x256xf32, #tpu.memory_space<vmem>>, vector<128x256xf32>
    %cst = arith.constant dense<0.000000e+00> : vector<128x256xf32>
    %6 = tpu.matmul %4, %5, %cst {dimension_numbers = #tpu.dot_dimension_numbers<[1], [0], [0], [1], [0, 0, 1, 1], [], []>} : vector<128x128xf32>, vector<128x256xf32>, vector<128x256xf32> -> vector<128x256xf32>
    %7 = arith.addf %3, %6 : vector<128x256xf32>
    %c0_6 = arith.constant 0 : index
    %c0_7 = arith.constant 0 : index
    %8 = vector.load %arg10[%c0_6, %c0_7] : memref<128x256xf32, #tpu.memory_space<vmem>>, vector<128x256xf32>
    tpu.vector_store %arg10[%c0_6, %c0_7], %7 {strides = array<i32>} : memref<128x256xf32, #tpu.memory_space<vmem>>, vector<128x256xf32>,
    %c0_i32_8 = arith.constant 0 : i32
    %9 = arith.cmpi eq, %arg1, %c0_i32_8 : i32
    %10 = arith.extui %9 : i1 to i32
    %c0_i32_9 = arith.constant 0 : i32
    %11 = arith.cmpi ne, %10, %c0_i32_9 : i32
    scf.if %11 {
      %c0_10 = arith.constant 0 : index
      %c0_11 = arith.constant 0 : index
      %12 = vector.load %arg10[%c0_10, %c0_11] : memref<128x256xf32, #tpu.memory_space<vmem>>, vector<128x256xf32>
      %c0_12 = arith.constant 0 : index
      %c0_13 = arith.constant 0 : index
      %13 = vector.load %arg5[%c0_12, %c0_13] : memref<256x256xf32, #tpu.memory_space<vmem>>, vector<256x256xf32>
      %cst_14 = arith.constant dense<0.000000e+00> : vector<128x256xf32>
      %14 = tpu.matmul %12, %13, %cst_14 {dimension_numbers = #tpu.dot_dimension_numbers<[1], [0], [0], [1], [0, 0, 1, 1], [], []>} : vector<128x256xf32>, vector<256x256xf32>, vector<128x256xf32> -> vector<128x256xf32>
      %c0_15 = arith.constant 0 : index
      %c0_16 = arith.constant 0 : index
      %15 = vector.load %arg6[%c0_15, %c0_16] : memref<1x256xf32, #tpu.memory_space<vmem>>, vector<1x256xf32>
      %16 = vector.broadcast %15 : vector<1x256xf32> to vector<128x256xf32>
      %17 = arith.addf %14, %16 : vector<128x256xf32>
      %18 = vector.extract_strided_slice %17 {offsets = [0, 0], sizes = [128, 128], strides = [1, 1]} : vector<128x256xf32> to vector<128x128xf32>
      %19 = arith.negf %18 : vector<128x128xf32>
      %20 = math.exp %19 : vector<128x128xf32>
      %cst_17 = arith.constant 1.000000e+00 : f32
      %21 = vector.broadcast %cst_17 : f32 to vector<128x128xf32>
      %22 = arith.addf %21, %20 : vector<128x128xf32>
      %23 = arith.divf %21, %22 : vector<128x128xf32>
      %24 = vector.extract_strided_slice %17 {offsets = [0, 128], sizes = [128, 128], strides = [1, 1]} : vector<128x256xf32> to vector<128x128xf32>
      %25 = arith.negf %24 : vector<128x128xf32>
      %26 = math.exp %25 : vector<128x128xf32>
      %cst_18 = arith.constant 1.000000e+00 : f32
      %27 = vector.broadcast %cst_18 : f32 to vector<128x128xf32>
      %28 = arith.addf %27, %26 : vector<128x128xf32>
      %29 = arith.divf %27, %28 : vector<128x128xf32>
      %30 = vector.extract_strided_slice %12 {offsets = [0, 0], sizes = [128, 128], strides = [1, 1]} : vector<128x256xf32> to vector<128x128xf32>
      %c0_19 = arith.constant 0 : index
      %c0_20 = arith.constant 0 : index
      %31 = vector.load %arg7[%c0_19, %c0_20] : memref<128x128xf32, #tpu.memory_space<vmem>>, vector<128x128xf32>
      tpu.vector_store %arg7[%c0_19, %c0_20], %30 {strides = array<i32>} : memref<128x128xf32, #tpu.memory_space<vmem>>, vector<128x128xf32>,
      %c0_21 = arith.constant 0 : index
      %c0_22 = arith.constant 0 : index
      %32 = vector.load %arg8[%c0_21, %c0_22] : memref<128x128xf32, #tpu.memory_space<vmem>>, vector<128x128xf32>
      tpu.vector_store %arg8[%c0_21, %c0_22], %23 {strides = array<i32>} : memref<128x128xf32, #tpu.memory_space<vmem>>, vector<128x128xf32>,
      %c0_23 = arith.constant 0 : index
      %c0_24 = arith.constant 0 : index
      %33 = vector.load %arg4[%c0_23, %c0_24] : memref<128x128xf32, #tpu.memory_space<vmem>>, vector<128x128xf32>
      %34 = arith.mulf %29, %33 : vector<128x128xf32>
      %c0_25 = arith.constant 0 : index
      %c0_26 = arith.constant 0 : index
      %35 = vector.load %arg9[%c0_25, %c0_26] : memref<128x128xf32, #tpu.memory_space<vmem>>, vector<128x128xf32>
      tpu.vector_store %arg9[%c0_25, %c0_26], %34 {strides = array<i32>} : memref<128x128xf32, #tpu.memory_space<vmem>>, vector<128x128xf32>,
    } else {
    }
    return
  }
  func.func @transform_0(%arg0: i32, %arg1: i32) -> (i32, i32) {
    %c0_i32 = arith.constant 0 : i32
    return %arg0, %arg1 : i32, i32
  }
  func.func @transform_1(%arg0: i32, %arg1: i32) -> (i32, i32) {
    %c0_i32 = arith.constant 0 : i32
    %c0_i32_0 = arith.constant 0 : i32
    return %arg1, %c0_i32 : i32, i32
  }
  func.func @transform_2(%arg0: i32, %arg1: i32) -> (i32, i32) {
    %c0_i32 = arith.constant 0 : i32
    %c0_i32_0 = arith.constant 0 : i32
    return %arg0, %c0_i32 : i32, i32
  }
  func.func @transform_3(%arg0: i32, %arg1: i32) -> (i32, i32) {
    %c0_i32 = arith.constant 0 : i32
    %c0_i32_0 = arith.constant 0 : i32
    %c0_i32_1 = arith.constant 0 : i32
    return %c0_i32, %c0_i32_0 : i32, i32
  }
  func.func @transform_4(%arg0: i32, %arg1: i32) -> (i32, i32) {
    %c0_i32 = arith.constant 0 : i32
    %c0_i32_0 = arith.constant 0 : i32
    %c0_i32_1 = arith.constant 0 : i32
    return %c0_i32, %c0_i32_0 : i32, i32
  }
  func.func @transform_5(%arg0: i32, %arg1: i32) -> (i32, i32) {
    %c0_i32 = arith.constant 0 : i32
    %c0_i32_0 = arith.constant 0 : i32
    return %arg0, %c0_i32 : i32, i32
  }
  func.func @transform_6(%arg0: i32, %arg1: i32) -> (i32, i32) {
    %c0_i32 = arith.constant 0 : i32
    %c0_i32_0 = arith.constant 0 : i32
    return %arg0, %c0_i32 : i32, i32
  }
  func.func @transform_7(%arg0: i32, %arg1: i32) -> (i32, i32) {
    %c0_i32 = arith.constant 0 : i32
    %c0_i32_0 = arith.constant 0 : i32
    return %arg0, %c0_i32 : i32, i32
  }
}

</mosaic_0001>

<llo_original>
// kernel: tpu_custom_call.1
$region0: #{tpu_custom_call.1}
  #allocation0 [shape = 'u32[]', space=smem, size = 0x4, offset = 0x4, fixed_abs, tag = 'smem constant byte address 0x4 - core index']
  #allocation1 [shape = 'u32[144,128]{1,0:T(1,128)}', space=vmem, size = 0x12000, scoped, tag = 'internal scratch']
  #allocation2 [shape = 'f32[128,256]{1,0:T(8,128)}', space=vmem, size = 0x20000, scoped, tag = 'scratch operand']
  %s0 = inlined_call_operand.hbm [shape: f32[128,128], index: 0, kind: input, shape index: {}]
  %s1 = inlined_call_operand.hbm [shape: f32[128,256], index: 1, kind: input, shape index: {}]
  %s2 = inlined_call_operand.hbm [shape: f32[128,128], index: 2, kind: input, shape index: {}]
  %s3 = inlined_call_operand.hbm [shape: f32[256,256], index: 3, kind: input, shape index: {}]
  %s4 = inlined_call_operand.vmem [shape: f32[1,256], index: 4, kind: input, shape index: {}]
  %s5 = inlined_call_operand.hbm [shape: f32[128,128], index: 5, kind: output, shape index: {0}]
  %s6 = inlined_call_operand.hbm [shape: f32[128,128], index: 6, kind: output, shape index: {1}]
  %s7 = inlined_call_operand.hbm [shape: f32[128,128], index: 7, kind: output, shape index: {2}]
  %8 = xla_tuple %s5, %s6, %s7
  %s9 = sld [smem:[#allocation0]]
  $region70: #{tpu_custom_call.1} parent=0
    _
  %s11 = ssub.s32 1, %s9
  %s12 = scalar_select 0, %s11, %s9
  $region1: #{tpu_custom_call.1} parent=0
    #allocation3 [shape = 'u8[65536]{0}', space=vmem, size = 0x10000, scoped, tag = 'input window, operand 0, single buffered']
    #allocation4 [shape = 's32[1]{0}', space=sflag, size = 0x4, scoped, tag = 'scoped memory for tpu_custom_call.1']
    #allocation5 [shape = 's32[1]{0}', space=sflag, size = 0x4, scoped, tag = 'scoped memory for tpu_custom_call.1']
    #allocation6 [shape = 'u8[131072]{0}', space=vmem, size = 0x20000, scoped, tag = 'input window, operand 1, single buffered']
    #allocation7 [shape = 's32[1]{0}', space=sflag, size = 0x4, scoped, tag = 'scoped memory for tpu_custom_call.1']
    #allocation8 [shape = 'u8[65536]{0}', space=vmem, size = 0x10000, scoped, tag = 'input window, operand 2, single buffered']
    #allocation9 [shape = 'u8[262144]{0}', space=vmem, size = 0x40000, scoped, tag = 'input window, operand 3, single buffered']
    #allocation10 [shape = 's32[1]{0}', space=sflag, size = 0x4, scoped, tag = 'scoped memory for tpu_custom_call.1']
    #allocation11 [shape = 'u8[65536]{0}', space=vmem, size = 0x10000, scoped, tag = 'output window, operand 0, single buffered']
    #allocation12 [shape = 'u8[65536]{0}', space=vmem, size = 0x10000, scoped, tag = 'output window, operand 1, single buffered']
    #allocation13 [shape = 's32[1]{0}', space=sflag, size = 0x4, scoped, tag = 'scoped memory for tpu_custom_call.1']
    #allocation14 [shape = 'u8[65536]{0}', space=vmem, size = 0x10000, scoped, tag = 'output window, operand 2, single buffered']
    %13 = vsyncpa [#allocation4], 0
    %14 = vsyncpa [#allocation7], 0
    %15 = vsyncpa [#allocation10], 0
    %16 = vsyncpa [#allocation5], 0
    %17 = vsyncpa [#allocation13], 0
    // Predicated region
    $region2: #{tpu_custom_call.1} parent=1 // pred_check
      _
    $region3: #{tpu_custom_call.1} parent=1 // pred_check_branch
      %19 = sbr.rel (0) target = $region5
    $region4: #{tpu_custom_call.1} parent=1 // pred_region
      %s21 = ssub.s32 2048, 2048
      %22 = vsyncadd [#allocation4], %s21
      %s23 = sshll.u32 [#allocation3], 4
      %s24 = int_to_ptr.vmem [resolvable:$true] %s23
      %29 = dma.hbm_to_vmem [thread:$0]  %s0, 2048, %s24, [#allocation4], 128, 128, 8
    $region5: #{tpu_custom_call.1} parent=1 // pred_fallthru
      _
    // Predicated region
    $region6: #{tpu_custom_call.1} parent=1 // pred_check
      _
    $region7: #{tpu_custom_call.1} parent=1 // pred_check_branch
      %31 = sbr.rel (0) target = $region9
    $region8: #{tpu_custom_call.1} parent=1 // pred_region
      %s33 = ssub.s32 4096, 4096
      %34 = vsyncadd [#allocation7], %s33
      %s35 = sshll.u32 [#allocation6], 4
      %s36 = int_to_ptr.vmem [resolvable:$true] %s35
      %41 = dma.hbm_to_vmem [thread:$0]  %s1, 4096, %s36, [#allocation7], 256, 256, 16
    $region9: #{tpu_custom_call.1} parent=1 // pred_fallthru
      _
    // Predicated region
    $region10: #{tpu_custom_call.1} parent=1 // pred_check
      _
    $region11: #{tpu_custom_call.1} parent=1 // pred_check_branch
      %43 = sbr.rel (0) target = $region13
    $region12: #{tpu_custom_call.1} parent=1 // pred_region
      %s45 = ssub.s32 2048, 2048
      %46 = vsyncadd [#allocation7], %s45
      %s47 = sshll.u32 [#allocation8], 4
      %s48 = int_to_ptr.vmem [resolvable:$true] %s47
      %53 = dma.hbm_to_vmem [thread:$0]  %s2, 2048, %s48, [#allocation7], 128, 128, 8
    $region13: #{tpu_custom_call.1} parent=1 // pred_fallthru
      _
    // Predicated region
    $region14: #{tpu_custom_call.1} parent=1 // pred_check
      _
    $region15: #{tpu_custom_call.1} parent=1 // pred_check_branch
      %55 = sbr.rel (0) target = $region17
    $region16: #{tpu_custom_call.1} parent=1 // pred_region
      %s57 = ssub.s32 8192, 8192
      %58 = vsyncadd [#allocation10], %s57
      %s59 = sshll.u32 [#allocation9], 4
      %s60 = int_to_ptr.vmem [resolvable:$true] %s59
      %65 = dma.hbm_to_vmem [thread:$0]  %s3, 8192, %s60, [#allocation10], 256, 256, 16
    $region17: #{tpu_custom_call.1} parent=1 // pred_fallthru
      _
    // Predicated region
    $region18: #{tpu_custom_call.1} parent=1 // pred_check
      _
    $region19: #{tpu_custom_call.1} parent=1 // pred_check_branch
      %67 = sbr.rel (0) target = $region21
    $region20: #{tpu_custom_call.1} parent=1 // pred_region
      _
    $region21: #{tpu_custom_call.1} parent=1 // pred_fallthru
      _
    // Predicated region
    $region22: #{tpu_custom_call.1} parent=1 // pred_check
      _
    $region23: #{tpu_custom_call.1} parent=1 // pred_check_branch
      %69 = sbr.rel (0) target = $region25
    $region24: #{tpu_custom_call.1} parent=1 // pred_region
      %70 = dma.done [#allocation4], 2048
    $region25: #{tpu_custom_call.1} parent=1 // pred_fallthru
      _
    // Predicated region
    $region26: #{tpu_custom_call.1} parent=1 // pred_check
      _
    $region27: #{tpu_custom_call.1} parent=1 // pred_check_branch
      %72 = sbr.rel (0) target = $region29
    $region28: #{tpu_custom_call.1} parent=1 // pred_region
      %73 = dma.done [#allocation7], 4096
    $region29: #{tpu_custom_call.1} parent=1 // pred_fallthru
      _
    // Predicated region
    $region30: #{tpu_custom_call.1} parent=1 // pred_check
      _
    $region31: #{tpu_custom_call.1} parent=1 // pred_check_branch
      %75 = sbr.rel (0) target = $region33
    $region32: #{tpu_custom_call.1} parent=1 // pred_region
      %76 = dma.done [#allocation7], 2048
    $region33: #{tpu_custom_call.1} parent=1 // pred_fallthru
      _
    // Predicated region
    $region34: #{tpu_custom_call.1} parent=1 // pred_check
      _
    $region35: #{tpu_custom_call.1} parent=1 // pred_check_branch
      %78 = sbr.rel (0) target = $region37
    $region36: #{tpu_custom_call.1} parent=1 // pred_region
      %79 = dma.done [#allocation10], 8192
    $region37: #{tpu_custom_call.1} parent=1 // pred_fallthru
      _
    %p80 = scmp.eq.s32.totalorder 0, 0
    // Predicated region
    $region38: #{tpu_custom_call.1} parent=1 // pred_check
      %p81 = pneg %p80
    $region39: #{tpu_custom_call.1} parent=1 // pred_check_branch
      %83 = sbr.rel (%p81) target = $region41
    $region40: #{tpu_custom_call.1} parent=1 // pred_region
      %84 = vst [vmem:[#allocation2] sm:$0xff] 0.0
      %85 = vst [vmem:[#allocation2 + $0x8] sm:$0xff] 0.0
      %86 = vst [vmem:[#allocation2 + $0x10] sm:$0xff] 0.0
      %87 = vst [vmem:[#allocation2 + $0x18] sm:$0xff] 0.0
      %88 = vst [vmem:[#allocation2 + $0x20] sm:$0xff] 0.0
      %89 = vst [vmem:[#allocation2 + $0x28] sm:$0xff] 0.0
      %90 = vst [vmem:[#allocation2 + $0x30] sm:$0xff] 0.0
      %91 = vst [vmem:[#allocation2 + $0x38] sm:$0xff] 0.0
      %92 = vst [vmem:[#allocation2 + $0x40] sm:$0xff] 0.0
      %93 = vst [vmem:[#allocation2 + $0x48] sm:$0xff] 0.0
      %94 = vst [vmem:[#allocation2 + $0x50] sm:$0xff] 0.0
      %95 = vst [vmem:[#allocation2 + $0x58] sm:$0xff] 0.0
      %96 = vst [vmem:[#allocation2 + $0x60] sm:$0xff] 0.0
      %97 = vst [vmem:[#allocation2 + $0x68] sm:$0xff] 0.0
      %98 = vst [vmem:[#allocation2 + $0x70] sm:$0xff] 0.0
      %99 = vst [vmem:[#allocation2 + $0x78] sm:$0xff] 0.0
      %100 = vst [vmem:[#allocation2 + $0x80] sm:$0xff] 0.0
      %101 = vst [vmem:[#allocation2 + $0x88] sm:$0xff] 0.0
      %102 = vst [vmem:[#allocation2 + $0x90] sm:$0xff] 0.0
      %103 = vst [vmem:[#allocation2 + $0x98] sm:$0xff] 0.0
      %104 = vst [vmem:[#allocation2 + $0xa0] sm:$0xff] 0.0
      %105 = vst [vmem:[#allocation2 + $0xa8] sm:$0xff] 0.0
      %106 = vst [vmem:[#allocation2 + $0xb0] sm:$0xff] 0.0
      %107 = vst [vmem:[#allocation2 + $0xb8] sm:$0xff] 0.0
      %108 = vst [vmem:[#allocation2 + $0xc0] sm:$0xff] 0.0
      %109 = vst [vmem:[#allocation2 + $0xc8] sm:$0xff] 0.0
      %110 = vst [vmem:[#allocation2 + $0xd0] sm:$0xff] 0.0
      %111 = vst [vmem:[#allocation2 + $0xd8] sm:$0xff] 0.0
      %112 = vst [vmem:[#allocation2 + $0xe0] sm:$0xff] 0.0
      %113 = vst [vmem:[#allocation2 + $0xe8] sm:$0xff] 0.0
      %114 = vst [vmem:[#allocation2 + $0xf0] sm:$0xff] 0.0
      %115 = vst [vmem:[#allocation2 + $0xf8] sm:$0xff] 0.0
    $region41: #{tpu_custom_call.1} parent=1 // pred_fallthru
      _
    %v116 = vld [vmem:[#allocation2] sm:$0xff]
    %v117 = vld [vmem:[#allocation2 + $0x8] sm:$0xff]
    %v118 = vld [vmem:[#allocation2 + $0x10] sm:$0xff]
    %v119 = vld [vmem:[#allocation2 + $0x18] sm:$0xff]
    %v120 = vld [vmem:[#allocation2 + $0x20] sm:$0xff]
    %v121 = vld [vmem:[#allocation2 + $0x28] sm:$0xff]
    %v122 = vld [vmem:[#allocation2 + $0x30] sm:$0xff]
    %v123 = vld [vmem:[#allocation2 + $0x38] sm:$0xff]
    %v124 = vld [vmem:[#allocation2 + $0x40] sm:$0xff]
    %v125 = vld [vmem:[#allocation2 + $0x48] sm:$0xff]
    %v126 = vld [vmem:[#allocation2 + $0x50] sm:$0xff]
    %v127 = vld [vmem:[#allocation2 + $0x58] sm:$0xff]
    %v128 = vld [vmem:[#allocation2 + $0x60] sm:$0xff]
    %v129 = vld [vmem:[#allocation2 + $0x68] sm:$0xff]
    %v130 = vld [vmem:[#allocation2 + $0x70] sm:$0xff]
    %v131 = vld [vmem:[#allocation2 + $0x78] sm:$0xff]
    %v132 = vld [vmem:[#allocation2 + $0x80] sm:$0xff]
    %v133 = vld [vmem:[#allocation2 + $0x88] sm:$0xff]
    %v134 = vld [vmem:[#allocation2 + $0x90] sm:$0xff]
    %v135 = vld [vmem:[#allocation2 + $0x98] sm:$0xff]
    %v136 = vld [vmem:[#allocation2 + $0xa0] sm:$0xff]
    %v137 = vld [vmem:[#allocation2 + $0xa8] sm:$0xff]
    %v138 = vld [vmem:[#allocation2 + $0xb0] sm:$0xff]
    %v139 = vld [vmem:[#allocation2 + $0xb8] sm:$0xff]
    %v140 = vld [vmem:[#allocation2 + $0xc0] sm:$0xff]
    %v141 = vld [vmem:[#allocation2 + $0xc8] sm:$0xff]
    %v142 = vld [vmem:[#allocation2 + $0xd0] sm:$0xff]
    %v143 = vld [vmem:[#allocation2 + $0xd8] sm:$0xff]
    %v144 = vld [vmem:[#allocation2 + $0xe0] sm:$0xff]
    %v145 = vld [vmem:[#allocation2 + $0xe8] sm:$0xff]
    %v146 = vld [vmem:[#allocation2 + $0xf0] sm:$0xff]
    %v147 = vld [vmem:[#allocation2 + $0xf8] sm:$0xff]
    %v148 = vld [vmem:[#allocation3] sm:$0xff]
    %v149 = vld [vmem:[#allocation3 + $0x8] sm:$0xff]
    %v150 = vld [vmem:[#allocation3 + $0x10] sm:$0xff]
    %v151 = vld [vmem:[#allocation3 + $0x18] sm:$0xff]
    %v152 = vld [vmem:[#allocation3 + $0x20] sm:$0xff]
    %v153 = vld [vmem:[#allocation3 + $0x28] sm:$0xff]
    %v154 = vld [vmem:[#allocation3 + $0x30] sm:$0xff]
    %v155 = vld [vmem:[#allocation3 + $0x38] sm:$0xff]
    %v156 = vld [vmem:[#allocation3 + $0x40] sm:$0xff]
    %v157 = vld [vmem:[#allocation3 + $0x48] sm:$0xff]
    %v158 = vld [vmem:[#allocation3 + $0x50] sm:$0xff]
    %v159 = vld [vmem:[#allocation3 + $0x58] sm:$0xff]
    %v160 = vld [vmem:[#allocation3 + $0x60] sm:$0xff]
    %v161 = vld [vmem:[#allocation3 + $0x68] sm:$0xff]
    %v162 = vld [vmem:[#allocation3 + $0x70] sm:$0xff]
    %v163 = vld [vmem:[#allocation3 + $0x78] sm:$0xff]
    %v164 = vld [vmem:[#allocation6] sm:$0xff]
    %v165 = vld [vmem:[#allocation6 + $0x8] sm:$0xff]
    %v166 = vld [vmem:[#allocation6 + $0x10] sm:$0xff]
    %v167 = vld [vmem:[#allocation6 + $0x18] sm:$0xff]
    %v168 = vld [vmem:[#allocation6 + $0x20] sm:$0xff]
    %v169 = vld [vmem:[#allocation6 + $0x28] sm:$0xff]
    %v170 = vld [vmem:[#allocation6 + $0x30] sm:$0xff]
    %v171 = vld [vmem:[#allocation6 + $0x38] sm:$0xff]
    %v172 = vld [vmem:[#allocation6 + $0x40] sm:$0xff]
    %v173 = vld [vmem:[#allocation6 + $0x48] sm:$0xff]
    %v174 = vld [vmem:[#allocation6 + $0x50] sm:$0xff]
    %v175 = vld [vmem:[#allocation6 + $0x58] sm:$0xff]
    %v176 = vld [vmem:[#allocation6 + $0x60] sm:$0xff]
    %v177 = vld [vmem:[#allocation6 + $0x68] sm:$0xff]
    %v178 = vld [vmem:[#allocation6 + $0x70] sm:$0xff]
    %v179 = vld [vmem:[#allocation6 + $0x78] sm:$0xff]
    %v180 = vld [vmem:[#allocation6 + $0x80] sm:$0xff]
    %v181 = vld [vmem:[#allocation6 + $0x88] sm:$0xff]
    %v182 = vld [vmem:[#allocation6 + $0x90] sm:$0xff]
    %v183 = vld [vmem:[#allocation6 + $0x98] sm:$0xff]
    %v184 = vld [vmem:[#allocation6 + $0xa0] sm:$0xff]
    %v185 = vld [vmem:[#allocation6 + $0xa8] sm:$0xff]
    %v186 = vld [vmem:[#allocation6 + $0xb0] sm:$0xff]
    %v187 = vld [vmem:[#allocation6 + $0xb8] sm:$0xff]
    %v188 = vld [vmem:[#allocation6 + $0xc0] sm:$0xff]
    %v189 = vld [vmem:[#allocation6 + $0xc8] sm:$0xff]
    %v190 = vld [vmem:[#allocation6 + $0xd0] sm:$0xff]
    %v191 = vld [vmem:[#allocation6 + $0xd8] sm:$0xff]
    %v192 = vld [vmem:[#allocation6 + $0xe0] sm:$0xff]
    %v193 = vld [vmem:[#allocation6 + $0xe8] sm:$0xff]
    %v194 = vld [vmem:[#allocation6 + $0xf0] sm:$0xff]
    %v195 = vld [vmem:[#allocation6 + $0xf8] sm:$0xff]
    %196 = vmatprep.subr.mxu0 %v165
    %197 = vmatpush1.msra.mxu0 %v164
    %198 = vmatprep.subr.mxu0 %v167
    %199 = vmatpush1.msra.mxu0 %v166
    %200 = vmatprep.subr.mxu0 %v169
    %201 = vmatpush1.msra.mxu0 %v168
    %202 = vmatprep.subr.mxu0 %v171
    %203 = vmatpush1.msra.mxu0 %v170
    %204 = vmatprep.subr.mxu0 %v173
    %205 = vmatpush1.msra.mxu0 %v172
    %206 = vmatprep.subr.mxu0 %v175
    %207 = vmatpush1.msra.mxu0 %v174
    %208 = vmatprep.subr.mxu0 %v177
    %209 = vmatpush1.msra.mxu0 %v176
    %210 = vmatprep.subr.mxu0 %v179
    %211 = vmatpush1.msra.mxu0 %v178
    %212 = vmatprep.subr.mxu0 %v181
    %213 = vmatpush1.msra.mxu0 %v180
    %214 = vmatprep.subr.mxu0 %v183
    %215 = vmatpush1.msra.mxu0 %v182
    %216 = vmatprep.subr.mxu0 %v185
    %217 = vmatpush1.msra.mxu0 %v184
    %218 = vmatprep.subr.mxu0 %v187
    %219 = vmatpush1.msra.mxu0 %v186
    %220 = vmatprep.subr.mxu0 %v189
    %221 = vmatpush1.msra.mxu0 %v188
    %222 = vmatprep.subr.mxu0 %v191
    %223 = vmatpush1.msra.mxu0 %v190
    %224 = vmatprep.subr.mxu0 %v193
    %225 = vmatpush1.msra.mxu0 %v192
    %226 = vmatprep.subr.mxu0 %v195
    %227 = vmatpush1.msra.mxu0 %v194
    %228 = vmatprep.subr.mxu0 0.0
    %229 = vmatpush1.msra.mxu0 0.0
    %230 = vmatprep.subr.mxu0 0.0
    %231 = vmatpush1.msra.mxu0 0.0
    %232 = vmatprep.subr.mxu0 0.0
    %233 = vmatpush1.msra.mxu0 0.0
    %234 = vmatprep.subr.mxu0 0.0
    %235 = vmatpush1.msra.mxu0 0.0
    %236 = vmatprep.subr.mxu0 0.0
    %237 = vmatpush1.msra.mxu0 0.0
    %238 = vmatprep.subr.mxu0 0.0
    %239 = vmatpush1.msra.mxu0 0.0
    %240 = vmatprep.subr.mxu0 0.0
    %241 = vmatpush1.msra.mxu0 0.0
    %242 = vmatprep.subr.mxu0 0.0
    %243 = vmatpush1.msra.mxu0 0.0
    %244 = vmatprep.subr.mxu0 0.0
    %245 = vmatpush1.msra.mxu0 0.0
    %246 = vmatprep.subr.mxu0 0.0
    %247 = vmatpush1.msra.mxu0 0.0
    %248 = vmatprep.subr.mxu0 0.0
    %249 = vmatpush1.msra.mxu0 0.0
    %250 = vmatprep.subr.mxu0 0.0
    %251 = vmatpush1.msra.mxu0 0.0
    %252 = vmatprep.subr.mxu0 0.0
    %253 = vmatpush1.msra.mxu0 0.0
    %254 = vmatprep.subr.mxu0 0.0
    %255 = vmatpush1.msra.mxu0 0.0
    %256 = vmatprep.subr.mxu0 0.0
    %257 = vmatpush1.msra.mxu0 0.0
    %258 = vmatprep.subr.mxu0 0.0
    %259 = vmatpush1.msra.mxu0 0.0
    %260 = vmatprep.mubr.f32.mxu0 0.0
    %261 = vmatmul.mubr.f32.gmra.mrb[0].mxu0 %v148
    %v262 = vpop.f32.mrb[0].mxu0
    %v263 = vadd.f32 0.0, %v262
    %v264 = vpop.f32.mrb[0].mxu0
    %v265 = vadd.f32 0.0, %v264
    %266 = vmatprep.mubr.f32.mxu0 0.0
    %267 = vmatmul.mubr.f32.gmra.mrb[0].mxu0 %v149
    %v268 = vpop.f32.mrb[0].mxu0
    %v269 = vadd.f32 0.0, %v268
    %v270 = vpop.f32.mrb[0].mxu0
    %v271 = vadd.f32 0.0, %v270
    %272 = vmatprep.mubr.f32.mxu0 0.0
    %273 = vmatmul.mubr.f32.gmra.mrb[0].mxu0 %v150
    %v274 = vpop.f32.mrb[0].mxu0
    %v275 = vadd.f32 0.0, %v274
    %v276 = vpop.f32.mrb[0].mxu0
    %v277 = vadd.f32 0.0, %v276
    %278 = vmatprep.mubr.f32.mxu0 0.0
    %279 = vmatmul.mubr.f32.gmra.mrb[0].mxu0 %v151
    %v280 = vpop.f32.mrb[0].mxu0
    %v281 = vadd.f32 0.0, %v280
    %v282 = vpop.f32.mrb[0].mxu0
    %v283 = vadd.f32 0.0, %v282
    %284 = vmatprep.mubr.f32.mxu0 0.0
    %285 = vmatmul.mubr.f32.gmra.mrb[0].mxu0 %v152
    %v286 = vpop.f32.mrb[0].mxu0
    %v287 = vadd.f32 0.0, %v286
    %v288 = vpop.f32.mrb[0].mxu0
    %v289 = vadd.f32 0.0, %v288
    %290 = vmatprep.mubr.f32.mxu0 0.0
    %291 = vmatmul.mubr.f32.gmra.mrb[0].mxu0 %v153
    %v292 = vpop.f32.mrb[0].mxu0
    %v293 = vadd.f32 0.0, %v292
    %v294 = vpop.f32.mrb[0].mxu0
    %v295 = vadd.f32 0.0, %v294
    %296 = vmatprep.mubr.f32.mxu0 0.0
    %297 = vmatmul.mubr.f32.gmra.mrb[0].mxu0 %v154
    %v298 = vpop.f32.mrb[0].mxu0
    %v299 = vadd.f32 0.0, %v298
    %v300 = vpop.f32.mrb[0].mxu0
    %v301 = vadd.f32 0.0, %v300
    %302 = vmatprep.mubr.f32.mxu0 0.0
    %303 = vmatmul.mubr.f32.gmra.mrb[0].mxu0 %v155
    %v304 = vpop.f32.mrb[0].mxu0
    %v305 = vadd.f32 0.0, %v304
    %v306 = vpop.f32.mrb[0].mxu0
    %v307 = vadd.f32 0.0, %v306
    %308 = vmatprep.mubr.f32.mxu0 0.0
    %309 = vmatmul.mubr.f32.gmra.mrb[0].mxu0 %v156
    %v310 = vpop.f32.mrb[0].mxu0
    %v311 = vadd.f32 0.0, %v310
    %v312 = vpop.f32.mrb[0].mxu0
    %v313 = vadd.f32 0.0, %v312
    %314 = vmatprep.mubr.f32.mxu0 0.0
    %315 = vmatmul.mubr.f32.gmra.mrb[0].mxu0 %v157
    %v316 = vpop.f32.mrb[0].mxu0
    %v317 = vadd.f32 0.0, %v316
    %v318 = vpop.f32.mrb[0].mxu0
    %v319 = vadd.f32 0.0, %v318
    %320 = vmatprep.mubr.f32.mxu0 0.0
    %321 = vmatmul.mubr.f32.gmra.mrb[0].mxu0 %v158
    %v322 = vpop.f32.mrb[0].mxu0
    %v323 = vadd.f32 0.0, %v322
    %v324 = vpop.f32.mrb[0].mxu0
    %v325 = vadd.f32 0.0, %v324
    %326 = vmatprep.mubr.f32.mxu0 0.0
    %327 = vmatmul.mubr.f32.gmra.mrb[0].mxu0 %v159
    %v328 = vpop.f32.mrb[0].mxu0
    %v329 = vadd.f32 0.0, %v328
    %v330 = vpop.f32.mrb[0].mxu0
    %v331 = vadd.f32 0.0, %v330
    %332 = vmatprep.mubr.f32.mxu0 0.0
    %333 = vmatmul.mubr.f32.gmra.mrb[0].mxu0 %v160
    %v334 = vpop.f32.mrb[0].mxu0
    %v335 = vadd.f32 0.0, %v334
    %v336 = vpop.f32.mrb[0].mxu0
    %v337 = vadd.f32 0.0, %v336
    %338 = vmatprep.mubr.f32.mxu0 0.0
    %339 = vmatmul.mubr.f32.gmra.mrb[0].mxu0 %v161
    %v340 = vpop.f32.mrb[0].mxu0
    %v341 = vadd.f32 0.0, %v340
    %v342 = vpop.f32.mrb[0].mxu0
    %v343 = vadd.f32 0.0, %v342
    %344 = vmatprep.mubr.f32.mxu0 0.0
    %345 = vmatmul.mubr.f32.gmra.mrb[0].mxu0 %v162
    %v346 = vpop.f32.mrb[0].mxu0
    %v347 = vadd.f32 0.0, %v346
    %v348 = vpop.f32.mrb[0].mxu0
    %v349 = vadd.f32 0.0, %v348
    %350 = vmatprep.mubr.f32.mxu0 0.0
    %351 = vmatmul.mubr.f32.gmra.mrb[0].mxu0 %v163
    %v352 = vpop.f32.mrb[0].mxu0
    %v353 = vadd.f32 0.0, %v352
    %v354 = vpop.f32.mrb[0].mxu0
    %v355 = vadd.f32 0.0, %v354
    %356 = vdwg.mxu0
    %v357 = vadd.f32 %v116, %v263
    %v358 = vadd.f32 %v117, %v265
    %v359 = vadd.f32 %v118, %v269
    %v360 = vadd.f32 %v119, %v271
    %v361 = vadd.f32 %v120, %v275
    %v362 = vadd.f32 %v121, %v277
    %v363 = vadd.f32 %v122, %v281
    %v364 = vadd.f32 %v123, %v283
    %v365 = vadd.f32 %v124, %v287
    %v366 = vadd.f32 %v125, %v289
    %v367 = vadd.f32 %v126, %v293
    %v368 = vadd.f32 %v127, %v295
    %v369 = vadd.f32 %v128, %v299
    %v370 = vadd.f32 %v129, %v301
    %v371 = vadd.f32 %v130, %v305
    %v372 = vadd.f32 %v131, %v307
    %v373 = vadd.f32 %v132, %v311
    %v374 = vadd.f32 %v133, %v313
    %v375 = vadd.f32 %v134, %v317
    %v376 = vadd.f32 %v135, %v319
    %v377 = vadd.f32 %v136, %v323
    %v378 = vadd.f32 %v137, %v325
    %v379 = vadd.f32 %v138, %v329
    %v380 = vadd.f32 %v139, %v331
    %v381 = vadd.f32 %v140, %v335
    %v382 = vadd.f32 %v141, %v337
    %v383 = vadd.f32 %v142, %v341
    %v384 = vadd.f32 %v143, %v343
    %v385 = vadd.f32 %v144, %v347
    %v386 = vadd.f32 %v145, %v349
    %v387 = vadd.f32 %v146, %v353
    %v388 = vadd.f32 %v147, %v355
    %389 = vst [vmem:[#allocation2] sm:$0xff] %v357
    %390 = vst [vmem:[#allocation2 + $0x8] sm:$0xff] %v358
    %391 = vst [vmem:[#allocation2 + $0x10] sm:$0xff] %v359
    %392 = vst [vmem:[#allocation2 + $0x18] sm:$0xff] %v360
    %393 = vst [vmem:[#allocation2 + $0x20] sm:$0xff] %v361
    %394 = vst [vmem:[#allocation2 + $0x28] sm:$0xff] %v362
    %395 = vst [vmem:[#allocation2 + $0x30] sm:$0xff] %v363
    %396 = vst [vmem:[#allocation2 + $0x38] sm:$0xff] %v364
    %397 = vst [vmem:[#allocation2 + $0x40] sm:$0xff] %v365
    %398 = vst [vmem:[#allocation2 + $0x48] sm:$0xff] %v366
    %399 = vst [vmem:[#allocation2 + $0x50] sm:$0xff] %v367
    %400 = vst [vmem:[#allocation2 + $0x58] sm:$0xff] %v368
    %401 = vst [vmem:[#allocation2 + $0x60] sm:$0xff] %v369
    %402 = vst [vmem:[#allocation2 + $0x68] sm:$0xff] %v370
    %403 = vst [vmem:[#allocation2 + $0x70] sm:$0xff] %v371
    %404 = vst [vmem:[#allocation2 + $0x78] sm:$0xff] %v372
    %405 = vst [vmem:[#allocation2 + $0x80] sm:$0xff] %v373
    %406 = vst [vmem:[#allocation2 + $0x88] sm:$0xff] %v374
    %407 = vst [vmem:[#allocation2 + $0x90] sm:$0xff] %v375
    %408 = vst [vmem:[#allocation2 + $0x98] sm:$0xff] %v376
    %409 = vst [vmem:[#allocation2 + $0xa0] sm:$0xff] %v377
    %410 = vst [vmem:[#allocation2 + $0xa8] sm:$0xff] %v378
    %411 = vst [vmem:[#allocation2 + $0xb0] sm:$0xff] %v379
    %412 = vst [vmem:[#allocation2 + $0xb8] sm:$0xff] %v380
    %413 = vst [vmem:[#allocation2 + $0xc0] sm:$0xff] %v381
    %414 = vst [vmem:[#allocation2 + $0xc8] sm:$0xff] %v382
    %415 = vst [vmem:[#allocation2 + $0xd0] sm:$0xff] %v383
    %416 = vst [vmem:[#allocation2 + $0xd8] sm:$0xff] %v384
    %417 = vst [vmem:[#allocation2 + $0xe0] sm:$0xff] %v385
    %418 = vst [vmem:[#allocation2 + $0xe8] sm:$0xff] %v386
    %419 = vst [vmem:[#allocation2 + $0xf0] sm:$0xff] %v387
    %420 = vst [vmem:[#allocation2 + $0xf8] sm:$0xff] %v388
    // Predicated region
    $region42: #{tpu_custom_call.1} parent=1 // pred_check
      %p421 = pneg %p80
    $region43: #{tpu_custom_call.1} parent=1 // pred_check_branch
      %423 = sbr.rel (%p421) target = $region45
    $region44: #{tpu_custom_call.1} parent=1 // pred_region
      %v424 = vld [vmem:[#allocation2] sm:$0xff]
      %v425 = vld [vmem:[#allocation2 + $0x8] sm:$0xff]
      %v426 = vld [vmem:[#allocation2 + $0x10] sm:$0xff]
      %v427 = vld [vmem:[#allocation2 + $0x18] sm:$0xff]
      %v428 = vld [vmem:[#allocation2 + $0x20] sm:$0xff]
      %v429 = vld [vmem:[#allocation2 + $0x28] sm:$0xff]
      %v430 = vld [vmem:[#allocation2 + $0x30] sm:$0xff]
      %v431 = vld [vmem:[#allocation2 + $0x38] sm:$0xff]
      %v432 = vld [vmem:[#allocation2 + $0x40] sm:$0xff]
      %v433 = vld [vmem:[#allocation2 + $0x48] sm:$0xff]
      %v434 = vld [vmem:[#allocation2 + $0x50] sm:$0xff]
      %v435 = vld [vmem:[#allocation2 + $0x58] sm:$0xff]
      %v436 = vld [vmem:[#allocation2 + $0x60] sm:$0xff]
      %v437 = vld [vmem:[#allocation2 + $0x68] sm:$0xff]
      %v438 = vld [vmem:[#allocation2 + $0x70] sm:$0xff]
      %v439 = vld [vmem:[#allocation2 + $0x78] sm:$0xff]
      %v440 = vld [vmem:[#allocation2 + $0x80] sm:$0xff]
      %v441 = vld [vmem:[#allocation2 + $0x88] sm:$0xff]
      %v442 = vld [vmem:[#allocation2 + $0x90] sm:$0xff]
      %v443 = vld [vmem:[#allocation2 + $0x98] sm:$0xff]
      %v444 = vld [vmem:[#allocation2 + $0xa0] sm:$0xff]
      %v445 = vld [vmem:[#allocation2 + $0xa8] sm:$0xff]
      %v446 = vld [vmem:[#allocation2 + $0xb0] sm:$0xff]
      %v447 = vld [vmem:[#allocation2 + $0xb8] sm:$0xff]
      %v448 = vld [vmem:[#allocation2 + $0xc0] sm:$0xff]
      %v449 = vld [vmem:[#allocation2 + $0xc8] sm:$0xff]
      %v450 = vld [vmem:[#allocation2 + $0xd0] sm:$0xff]
      %v451 = vld [vmem:[#allocation2 + $0xd8] sm:$0xff]
      %v452 = vld [vmem:[#allocation2 + $0xe0] sm:$0xff]
      %v453 = vld [vmem:[#allocation2 + $0xe8] sm:$0xff]
      %v454 = vld [vmem:[#allocation2 + $0xf0] sm:$0xff]
      %v455 = vld [vmem:[#allocation2 + $0xf8] sm:$0xff]
      %v456 = vld [vmem:[#allocation9] sm:$0xff]
      %v457 = vld [vmem:[#allocation9 + $0x8] sm:$0xff]
      %v458 = vld [vmem:[#allocation9 + $0x10] sm:$0xff]
      %v459 = vld [vmem:[#allocation9 + $0x18] sm:$0xff]
      %v460 = vld [vmem:[#allocation9 + $0x20] sm:$0xff]
      %v461 = vld [vmem:[#allocation9 + $0x28] sm:$0xff]
      %v462 = vld [vmem:[#allocation9 + $0x30] sm:$0xff]
      %v463 = vld [vmem:[#allocation9 + $0x38] sm:$0xff]
      %v464 = vld [vmem:[#allocation9 + $0x40] sm:$0xff]
      %v465 = vld [vmem:[#allocation9 + $0x48] sm:$0xff]
      %v466 = vld [vmem:[#allocation9 + $0x50] sm:$0xff]
      %v467 = vld [vmem:[#allocation9 + $0x58] sm:$0xff]
      %v468 = vld [vmem:[#allocation9 + $0x60] sm:$0xff]
      %v469 = vld [vmem:[#allocation9 + $0x68] sm:$0xff]
      %v470 = vld [vmem:[#allocation9 + $0x70] sm:$0xff]
      %v471 = vld [vmem:[#allocation9 + $0x78] sm:$0xff]
      %v472 = vld [vmem:[#allocation9 + $0x80] sm:$0xff]
      %v473 = vld [vmem:[#allocation9 + $0x88] sm:$0xff]
      %v474 = vld [vmem:[#allocation9 + $0x90] sm:$0xff]
      %v475 = vld [vmem:[#allocation9 + $0x98] sm:$0xff]
      %v476 = vld [vmem:[#allocation9 + $0xa0] sm:$0xff]
      %v477 = vld [vmem:[#allocation9 + $0xa8] sm:$0xff]
      %v478 = vld [vmem:[#allocation9 + $0xb0] sm:$0xff]
      %v479 = vld [vmem:[#allocation9 + $0xb8] sm:$0xff]
      %v480 = vld [vmem:[#allocation9 + $0xc0] sm:$0xff]
      %v481 = vld [vmem:[#allocation9 + $0xc8] sm:$0xff]
      %v482 = vld [vmem:[#allocation9 + $0xd0] sm:$0xff]
      %v483 = vld [vmem:[#allocation9 + $0xd8] sm:$0xff]
      %v484 = vld [vmem:[#allocation9 + $0xe0] sm:$0xff]
      %v485 = vld [vmem:[#allocation9 + $0xe8] sm:$0xff]
      %v486 = vld [vmem:[#allocation9 + $0xf0] sm:$0xff]
      %v487 = vld [vmem:[#allocation9 + $0xf8] sm:$0xff]
      %v488 = vld [vmem:[#allocation9 + $0x100] sm:$0xff]
      %v489 = vld [vmem:[#allocation9 + $0x108] sm:$0xff]
      %v490 = vld [vmem:[#allocation9 + $0x110] sm:$0xff]
      %v491 = vld [vmem:[#allocation9 + $0x118] sm:$0xff]
      %v492 = vld [vmem:[#allocation9 + $0x120] sm:$0xff]
      %v493 = vld [vmem:[#allocation9 + $0x128] sm:$0xff]
      %v494 = vld [vmem:[#allocation9 + $0x130] sm:$0xff]
      %v495 = vld [vmem:[#allocation9 + $0x138] sm:$0xff]
      %v496 = vld [vmem:[#allocation9 + $0x140] sm:$0xff]
      %v497 = vld [vmem:[#allocation9 + $0x148] sm:$0xff]
      %v498 = vld [vmem:[#allocation9 + $0x150] sm:$0xff]
      %v499 = vld [vmem:[#allocation9 + $0x158] sm:$0xff]
      %v500 = vld [vmem:[#allocation9 + $0x160] sm:$0xff]
      %v501 = vld [vmem:[#allocation9 + $0x168] sm:$0xff]
      %v502 = vld [vmem:[#allocation9 + $0x170] sm:$0xff]
      %v503 = vld [vmem:[#allocation9 + $0x178] sm:$0xff]
      %v504 = vld [vmem:[#allocation9 + $0x180] sm:$0xff]
      %v505 = vld [vmem:[#allocation9 + $0x188] sm:$0xff]
      %v506 = vld [vmem:[#allocation9 + $0x190] sm:$0xff]
      %v507 = vld [vmem:[#allocation9 + $0x198] sm:$0xff]
      %v508 = vld [vmem:[#allocation9 + $0x1a0] sm:$0xff]
      %v509 = vld [vmem:[#allocation9 + $0x1a8] sm:$0xff]
      %v510 = vld [vmem:[#allocation9 + $0x1b0] sm:$0xff]
      %v511 = vld [vmem:[#allocation9 + $0x1b8] sm:$0xff]
      %v512 = vld [vmem:[#allocation9 + $0x1c0] sm:$0xff]
      %v513 = vld [vmem:[#allocation9 + $0x1c8] sm:$0xff]
      %v514 = vld [vmem:[#allocation9 + $0x1d0] sm:$0xff]
      %v515 = vld [vmem:[#allocation9 + $0x1d8] sm:$0xff]
      %v516 = vld [vmem:[#allocation9 + $0x1e0] sm:$0xff]
      %v517 = vld [vmem:[#allocation9 + $0x1e8] sm:$0xff]
      %v518 = vld [vmem:[#allocation9 + $0x1f0] sm:$0xff]
      %v519 = vld [vmem:[#allocation9 + $0x1f8] sm:$0xff]
      %v520 = vld [vmem:[%s4] sm:$0x3]
      %v522 = vlaneseq
      %v523 = vshrl.u32 %v522, 7
      %v524 = vsub.s32 0, %v523
      %v525 = vrot.slane %v520, %v524
      %v526 = vlaneseq
      %v527 = vshrl.u32 %v526, 7
      %v528 = vsub.s32 1, %v527
      %v529 = vrot.slane %v520, %v528
      %532 = vmatprep.subr.mxu0 %v457
      %533 = vmatpush1.msra.mxu0 %v456
      %534 = vmatprep.subr.mxu0 %v459
      %535 = vmatpush1.msra.mxu0 %v458
      %536 = vmatprep.subr.mxu0 %v461
      %537 = vmatpush1.msra.mxu0 %v460
      %538 = vmatprep.subr.mxu0 %v463
      %539 = vmatpush1.msra.mxu0 %v462
      %540 = vmatprep.subr.mxu0 %v465
      %541 = vmatpush1.msra.mxu0 %v464
      %542 = vmatprep.subr.mxu0 %v467
      %543 = vmatpush1.msra.mxu0 %v466
      %544 = vmatprep.subr.mxu0 %v469
      %545 = vmatpush1.msra.mxu0 %v468
      %546 = vmatprep.subr.mxu0 %v471
      %547 = vmatpush1.msra.mxu0 %v470
      %548 = vmatprep.subr.mxu0 %v473
      %549 = vmatpush1.msra.mxu0 %v472
      %550 = vmatprep.subr.mxu0 %v475
      %551 = vmatpush1.msra.mxu0 %v474
      %552 = vmatprep.subr.mxu0 %v477
      %553 = vmatpush1.msra.mxu0 %v476
      %554 = vmatprep.subr.mxu0 %v479
      %555 = vmatpush1.msra.mxu0 %v478
      %556 = vmatprep.subr.mxu0 %v481
      %557 = vmatpush1.msra.mxu0 %v480
      %558 = vmatprep.subr.mxu0 %v483
      %559 = vmatpush1.msra.mxu0 %v482
      %560 = vmatprep.subr.mxu0 %v485
      %561 = vmatpush1.msra.mxu0 %v484
      %562 = vmatprep.subr.mxu0 %v487
      %563 = vmatpush1.msra.mxu0 %v486
      %564 = vmatprep.subr.mxu0 %v489
      %565 = vmatpush1.msra.mxu0 %v488
      %566 = vmatprep.subr.mxu0 %v491
      %567 = vmatpush1.msra.mxu0 %v490
      %568 = vmatprep.subr.mxu0 %v493
      %569 = vmatpush1.msra.mxu0 %v492
      %570 = vmatprep.subr.mxu0 %v495
      %571 = vmatpush1.msra.mxu0 %v494
      %572 = vmatprep.subr.mxu0 %v497
      %573 = vmatpush1.msra.mxu0 %v496
      %574 = vmatprep.subr.mxu0 %v499
      %575 = vmatpush1.msra.mxu0 %v498
      %576 = vmatprep.subr.mxu0 %v501
      %577 = vmatpush1.msra.mxu0 %v500
      %578 = vmatprep.subr.mxu0 %v503
      %579 = vmatpush1.msra.mxu0 %v502
      %580 = vmatprep.subr.mxu0 %v505
      %581 = vmatpush1.msra.mxu0 %v504
      %582 = vmatprep.subr.mxu0 %v507
      %583 = vmatpush1.msra.mxu0 %v506
      %584 = vmatprep.subr.mxu0 %v509
      %585 = vmatpush1.msra.mxu0 %v508
      %586 = vmatprep.subr.mxu0 %v511
      %587 = vmatpush1.msra.mxu0 %v510
      %588 = vmatprep.subr.mxu0 %v513
      %589 = vmatpush1.msra.mxu0 %v512
      %590 = vmatprep.subr.mxu0 %v515
      %591 = vmatpush1.msra.mxu0 %v514
      %592 = vmatprep.subr.mxu0 %v517
      %593 = vmatpush1.msra.mxu0 %v516
      %594 = vmatprep.subr.mxu0 %v519
      %595 = vmatpush1.msra.mxu0 %v518
      %596 = vmatprep.mubr.f32.mxu0 %v425
      %597 = vmatmul.mubr.f32.gmra.mrb[0].mxu0 %v424
      %v598 = vpop.f32.mrb[0].mxu0
      %v599 = vadd.f32 %v525, %v598
      %v600 = vpop.f32.mrb[0].mxu0
      %v601 = vadd.f32 %v529, %v600
      %602 = vmatprep.mubr.f32.mxu0 %v427
      %603 = vmatmul.mubr.f32.gmra.mrb[0].mxu0 %v426
      %v604 = vpop.f32.mrb[0].mxu0
      %v605 = vadd.f32 %v525, %v604
      %v606 = vpop.f32.mrb[0].mxu0
      %v607 = vadd.f32 %v529, %v606
      %608 = vmatprep.mubr.f32.mxu0 %v429
      %609 = vmatmul.mubr.f32.gmra.mrb[0].mxu0 %v428
      %v610 = vpop.f32.mrb[0].mxu0
      %v611 = vadd.f32 %v525, %v610
      %v612 = vpop.f32.mrb[0].mxu0
      %v613 = vadd.f32 %v529, %v612
      %614 = vmatprep.mubr.f32.mxu0 %v431
      %615 = vmatmul.mubr.f32.gmra.mrb[0].mxu0 %v430
      %v616 = vpop.f32.mrb[0].mxu0
      %v617 = vadd.f32 %v525, %v616
      %v618 = vpop.f32.mrb[0].mxu0
      %v619 = vadd.f32 %v529, %v618
      %620 = vmatprep.mubr.f32.mxu0 %v433
      %621 = vmatmul.mubr.f32.gmra.mrb[0].mxu0 %v432
      %v622 = vpop.f32.mrb[0].mxu0
      %v623 = vadd.f32 %v525, %v622
      %v624 = vpop.f32.mrb[0].mxu0
      %v625 = vadd.f32 %v529, %v624
      %626 = vmatprep.mubr.f32.mxu0 %v435
      %627 = vmatmul.mubr.f32.gmra.mrb[0].mxu0 %v434
      %v628 = vpop.f32.mrb[0].mxu0
      %v629 = vadd.f32 %v525, %v628
      %v630 = vpop.f32.mrb[0].mxu0
      %v631 = vadd.f32 %v529, %v630
      %632 = vmatprep.mubr.f32.mxu0 %v437
      %633 = vmatmul.mubr.f32.gmra.mrb[0].mxu0 %v436
      %v634 = vpop.f32.mrb[0].mxu0
      %v635 = vadd.f32 %v525, %v634
      %v636 = vpop.f32.mrb[0].mxu0
      %v637 = vadd.f32 %v529, %v636
      %638 = vmatprep.mubr.f32.mxu0 %v439
      %639 = vmatmul.mubr.f32.gmra.mrb[0].mxu0 %v438
      %v640 = vpop.f32.mrb[0].mxu0
      %v641 = vadd.f32 %v525, %v640
      %v642 = vpop.f32.mrb[0].mxu0
      %v643 = vadd.f32 %v529, %v642
      %644 = vmatprep.mubr.f32.mxu0 %v441
      %645 = vmatmul.mubr.f32.gmra.mrb[0].mxu0 %v440
      %v646 = vpop.f32.mrb[0].mxu0
      %v647 = vadd.f32 %v525, %v646
      %v648 = vpop.f32.mrb[0].mxu0
      %v649 = vadd.f32 %v529, %v648
      %650 = vmatprep.mubr.f32.mxu0 %v443
      %651 = vmatmul.mubr.f32.gmra.mrb[0].mxu0 %v442
      %v652 = vpop.f32.mrb[0].mxu0
      %v653 = vadd.f32 %v525, %v652
      %v654 = vpop.f32.mrb[0].mxu0
      %v655 = vadd.f32 %v529, %v654
      %656 = vmatprep.mubr.f32.mxu0 %v445
      %657 = vmatmul.mubr.f32.gmra.mrb[0].mxu0 %v444
      %v658 = vpop.f32.mrb[0].mxu0
      %v659 = vadd.f32 %v525, %v658
      %v660 = vpop.f32.mrb[0].mxu0
      %v661 = vadd.f32 %v529, %v660
      %662 = vmatprep.mubr.f32.mxu0 %v447
      %663 = vmatmul.mubr.f32.gmra.mrb[0].mxu0 %v446
      %v664 = vpop.f32.mrb[0].mxu0
      %v665 = vadd.f32 %v525, %v664
      %v666 = vpop.f32.mrb[0].mxu0
      %v667 = vadd.f32 %v529, %v666
      %668 = vmatprep.mubr.f32.mxu0 %v449
      %669 = vmatmul.mubr.f32.gmra.mrb[0].mxu0 %v448
      %v670 = vpop.f32.mrb[0].mxu0
      %v671 = vadd.f32 %v525, %v670
      %v672 = vpop.f32.mrb[0].mxu0
      %v673 = vadd.f32 %v529, %v672
      %674 = vmatprep.mubr.f32.mxu0 %v451
      %675 = vmatmul.mubr.f32.gmra.mrb[0].mxu0 %v450
      %v676 = vpop.f32.mrb[0].mxu0
      %v677 = vadd.f32 %v525, %v676
      %v678 = vpop.f32.mrb[0].mxu0
      %v679 = vadd.f32 %v529, %v678
      %680 = vmatprep.mubr.f32.mxu0 %v453
      %681 = vmatmul.mubr.f32.gmra.mrb[0].mxu0 %v452
      %v682 = vpop.f32.mrb[0].mxu0
      %v683 = vadd.f32 %v525, %v682
      %v684 = vpop.f32.mrb[0].mxu0
      %v685 = vadd.f32 %v529, %v684
      %686 = vmatprep.mubr.f32.mxu0 %v455
      %687 = vmatmul.mubr.f32.gmra.mrb[0].mxu0 %v454
      %v688 = vpop.f32.mrb[0].mxu0
      %v689 = vadd.f32 %v525, %v688
      %v690 = vpop.f32.mrb[0].mxu0
      %v691 = vadd.f32 %v529, %v690
      %692 = vdwg.mxu0
      %v693 = vxor.u32 %v599, 2147483648
      %v694 = vxor.u32 %v605, 2147483648
      %v695 = vxor.u32 %v611, 2147483648
      %v696 = vxor.u32 %v617, 2147483648
      %v697 = vxor.u32 %v623, 2147483648
      %v698 = vxor.u32 %v629, 2147483648
      %v699 = vxor.u32 %v635, 2147483648
      %v700 = vxor.u32 %v641, 2147483648
      %v701 = vxor.u32 %v647, 2147483648
      %v702 = vxor.u32 %v653, 2147483648
      %v703 = vxor.u32 %v659, 2147483648
      %v704 = vxor.u32 %v665, 2147483648
      %v705 = vxor.u32 %v671, 2147483648
      %v706 = vxor.u32 %v677, 2147483648
      %v707 = vxor.u32 %v683, 2147483648
      %v708 = vxor.u32 %v689, 2147483648
      %v709 = vmul.f32 %v693, 1.442695
      %v710 = vpow.pop %v709
      %v711 = vmul.f32 %v694, 1.442695
      %v712 = vpow.pop %v711
      %v713 = vmul.f32 %v695, 1.442695
      %v714 = vpow.pop %v713
      %v715 = vmul.f32 %v696, 1.442695
      %v716 = vpow.pop %v715
      %v717 = vmul.f32 %v697, 1.442695
      %v718 = vpow.pop %v717
      %v719 = vmul.f32 %v698, 1.442695
      %v720 = vpow.pop %v719
      %v721 = vmul.f32 %v699, 1.442695
      %v722 = vpow.pop %v721
      %v723 = vmul.f32 %v700, 1.442695
      %v724 = vpow.pop %v723
      %v725 = vmul.f32 %v701, 1.442695
      %v726 = vpow.pop %v725
      %v727 = vmul.f32 %v702, 1.442695
      %v728 = vpow.pop %v727
      %v729 = vmul.f32 %v703, 1.442695
      %v730 = vpow.pop %v729
      %v731 = vmul.f32 %v704, 1.442695
      %v732 = vpow.pop %v731
      %v733 = vmul.f32 %v705, 1.442695
      %v734 = vpow.pop %v733
      %v735 = vmul.f32 %v706, 1.442695
      %v736 = vpow.pop %v735
      %v737 = vmul.f32 %v707, 1.442695
      %v738 = vpow.pop %v737
      %v739 = vmul.f32 %v708, 1.442695
      %v740 = vpow.pop %v739
      %v741 = vadd.f32 %v710, 1.0
      %v742 = vadd.f32 %v712, 1.0
      %v743 = vadd.f32 %v714, 1.0
      %v744 = vadd.f32 %v716, 1.0
      %v745 = vadd.f32 %v718, 1.0
      %v746 = vadd.f32 %v720, 1.0
      %v747 = vadd.f32 %v722, 1.0
      %v748 = vadd.f32 %v724, 1.0
      %v749 = vadd.f32 %v726, 1.0
      %v750 = vadd.f32 %v728, 1.0
      %v751 = vadd.f32 %v730, 1.0
      %v752 = vadd.f32 %v732, 1.0
      %v753 = vadd.f32 %v734, 1.0
      %v754 = vadd.f32 %v736, 1.0
      %v755 = vadd.f32 %v738, 1.0
      %v756 = vadd.f32 %v740, 1.0
      %v757 = vrcp.pop %v741
      %v758 = vmul.f32 1.0, %v757
      %v759 = vrcp.pop %v742
      %v760 = vmul.f32 1.0, %v759
      %v761 = vrcp.pop %v743
      %v762 = vmul.f32 1.0, %v761
      %v763 = vrcp.pop %v744
      %v764 = vmul.f32 1.0, %v763
      %v765 = vrcp.pop %v745
      %v766 = vmul.f32 1.0, %v765
      %v767 = vrcp.pop %v746
      %v768 = vmul.f32 1.0, %v767
      %v769 = vrcp.pop %v747
      %v770 = vmul.f32 1.0, %v769
      %v771 = vrcp.pop %v748
      %v772 = vmul.f32 1.0, %v771
      %v773 = vrcp.pop %v749
      %v774 = vmul.f32 1.0, %v773
      %v775 = vrcp.pop %v750
      %v776 = vmul.f32 1.0, %v775
      %v777 = vrcp.pop %v751
      %v778 = vmul.f32 1.0, %v777
      %v779 = vrcp.pop %v752
      %v780 = vmul.f32 1.0, %v779
      %v781 = vrcp.pop %v753
      %v782 = vmul.f32 1.0, %v781
      %v783 = vrcp.pop %v754
      %v784 = vmul.f32 1.0, %v783
      %v785 = vrcp.pop %v755
      %v786 = vmul.f32 1.0, %v785
      %v787 = vrcp.pop %v756
      %v788 = vmul.f32 1.0, %v787
      %v789 = vxor.u32 %v601, 2147483648
      %v790 = vxor.u32 %v607, 2147483648
      %v791 = vxor.u32 %v613, 2147483648
      %v792 = vxor.u32 %v619, 2147483648
      %v793 = vxor.u32 %v625, 2147483648
      %v794 = vxor.u32 %v631, 2147483648
      %v795 = vxor.u32 %v637, 2147483648
      %v796 = vxor.u32 %v643, 2147483648
      %v797 = vxor.u32 %v649, 2147483648
      %v798 = vxor.u32 %v655, 2147483648
      %v799 = vxor.u32 %v661, 2147483648
      %v800 = vxor.u32 %v667, 2147483648
      %v801 = vxor.u32 %v673, 2147483648
      %v802 = vxor.u32 %v679, 2147483648
      %v803 = vxor.u32 %v685, 2147483648
      %v804 = vxor.u32 %v691, 2147483648
      %v805 = vmul.f32 %v789, 1.442695
      %v806 = vpow.pop %v805
      %v807 = vmul.f32 %v790, 1.442695
      %v808 = vpow.pop %v807
      %v809 = vmul.f32 %v791, 1.442695
      %v810 = vpow.pop %v809
      %v811 = vmul.f32 %v792, 1.442695
      %v812 = vpow.pop %v811
      %v813 = vmul.f32 %v793, 1.442695
      %v814 = vpow.pop %v813
      %v815 = vmul.f32 %v794, 1.442695
      %v816 = vpow.pop %v815
      %v817 = vmul.f32 %v795, 1.442695
      %v818 = vpow.pop %v817
      %v819 = vmul.f32 %v796, 1.442695
      %v820 = vpow.pop %v819
      %v821 = vmul.f32 %v797, 1.442695
      %v822 = vpow.pop %v821
      %v823 = vmul.f32 %v798, 1.442695
      %v824 = vpow.pop %v823
      %v825 = vmul.f32 %v799, 1.442695
      %v826 = vpow.pop %v825
      %v827 = vmul.f32 %v800, 1.442695
      %v828 = vpow.pop %v827
      %v829 = vmul.f32 %v801, 1.442695
      %v830 = vpow.pop %v829
      %v831 = vmul.f32 %v802, 1.442695
      %v832 = vpow.pop %v831
      %v833 = vmul.f32 %v803, 1.442695
      %v834 = vpow.pop %v833
      %v835 = vmul.f32 %v804, 1.442695
      %v836 = vpow.pop %v835
      %v837 = vadd.f32 %v806, 1.0
      %v838 = vadd.f32 %v808, 1.0
      %v839 = vadd.f32 %v810, 1.0
      %v840 = vadd.f32 %v812, 1.0
      %v841 = vadd.f32 %v814, 1.0
      %v842 = vadd.f32 %v816, 1.0
      %v843 = vadd.f32 %v818, 1.0
      %v844 = vadd.f32 %v820, 1.0
      %v845 = vadd.f32 %v822, 1.0
      %v846 = vadd.f32 %v824, 1.0
      %v847 = vadd.f32 %v826, 1.0
      %v848 = vadd.f32 %v828, 1.0
      %v849 = vadd.f32 %v830, 1.0
      %v850 = vadd.f32 %v832, 1.0
      %v851 = vadd.f32 %v834, 1.0
      %v852 = vadd.f32 %v836, 1.0
      %v853 = vrcp.pop %v837
      %v854 = vmul.f32 1.0, %v853
      %v855 = vrcp.pop %v838
      %v856 = vmul.f32 1.0, %v855
      %v857 = vrcp.pop %v839
      %v858 = vmul.f32 1.0, %v857
      %v859 = vrcp.pop %v840
      %v860 = vmul.f32 1.0, %v859
      %v861 = vrcp.pop %v841
      %v862 = vmul.f32 1.0, %v861
      %v863 = vrcp.pop %v842
      %v864 = vmul.f32 1.0, %v863
      %v865 = vrcp.pop %v843
      %v866 = vmul.f32 1.0, %v865
      %v867 = vrcp.pop %v844
      %v868 = vmul.f32 1.0, %v867
      %v869 = vrcp.pop %v845
      %v870 = vmul.f32 1.0, %v869
      %v871 = vrcp.pop %v846
      %v872 = vmul.f32 1.0, %v871
      %v873 = vrcp.pop %v847
      %v874 = vmul.f32 1.0, %v873
      %v875 = vrcp.pop %v848
      %v876 = vmul.f32 1.0, %v875
      %v877 = vrcp.pop %v849
      %v878 = vmul.f32 1.0, %v877
      %v879 = vrcp.pop %v850
      %v880 = vmul.f32 1.0, %v879
      %v881 = vrcp.pop %v851
      %v882 = vmul.f32 1.0, %v881
      %v883 = vrcp.pop %v852
      %v884 = vmul.f32 1.0, %v883
      %885 = vst [vmem:[#allocation11] sm:$0xff] %v424
      %886 = vst [vmem:[#allocation11 + $0x8] sm:$0xff] %v426
      %887 = vst [vmem:[#allocation11 + $0x10] sm:$0xff] %v428
      %888 = vst [vmem:[#allocation11 + $0x18] sm:$0xff] %v430
      %889 = vst [vmem:[#allocation11 + $0x20] sm:$0xff] %v432
      %890 = vst [vmem:[#allocation11 + $0x28] sm:$0xff] %v434
      %891 = vst [vmem:[#allocation11 + $0x30] sm:$0xff] %v436
      %892 = vst [vmem:[#allocation11 + $0x38] sm:$0xff] %v438
      %893 = vst [vmem:[#allocation11 + $0x40] sm:$0xff] %v440
      %894 = vst [vmem:[#allocation11 + $0x48] sm:$0xff] %v442
      %895 = vst [vmem:[#allocation11 + $0x50] sm:$0xff] %v444
      %896 = vst [vmem:[#allocation11 + $0x58] sm:$0xff] %v446
      %897 = vst [vmem:[#allocation11 + $0x60] sm:$0xff] %v448
      %898 = vst [vmem:[#allocation11 + $0x68] sm:$0xff] %v450
      %899 = vst [vmem:[#allocation11 + $0x70] sm:$0xff] %v452
      %900 = vst [vmem:[#allocation11 + $0x78] sm:$0xff] %v454
      %901 = vst [vmem:[#allocation12] sm:$0xff] %v758
      %902 = vst [vmem:[#allocation12 + $0x8] sm:$0xff] %v760
      %903 = vst [vmem:[#allocation12 + $0x10] sm:$0xff] %v762
      %904 = vst [vmem:[#allocation12 + $0x18] sm:$0xff] %v764
      %905 = vst [vmem:[#allocation12 + $0x20] sm:$0xff] %v766
      %906 = vst [vmem:[#allocation12 + $0x28] sm:$0xff] %v768
      %907 = vst [vmem:[#allocation12 + $0x30] sm:$0xff] %v770
      %908 = vst [vmem:[#allocation12 + $0x38] sm:$0xff] %v772
      %909 = vst [vmem:[#allocation12 + $0x40] sm:$0xff] %v774
      %910 = vst [vmem:[#allocation12 + $0x48] sm:$0xff] %v776
      %911 = vst [vmem:[#allocation12 + $0x50] sm:$0xff] %v778
      %912 = vst [vmem:[#allocation12 + $0x58] sm:$0xff] %v780
      %913 = vst [vmem:[#allocation12 + $0x60] sm:$0xff] %v782
      %914 = vst [vmem:[#allocation12 + $0x68] sm:$0xff] %v784
      %915 = vst [vmem:[#allocation12 + $0x70] sm:$0xff] %v786
      %916 = vst [vmem:[#allocation12 + $0x78] sm:$0xff] %v788
      %v917 = vld [vmem:[#allocation8] sm:$0xff]
      %v918 = vld [vmem:[#allocation8 + $0x8] sm:$0xff]
      %v919 = vld [vmem:[#allocation8 + $0x10] sm:$0xff]
      %v920 = vld [vmem:[#allocation8 + $0x18] sm:$0xff]
      %v921 = vld [vmem:[#allocation8 + $0x20] sm:$0xff]
      %v922 = vld [vmem:[#allocation8 + $0x28] sm:$0xff]
      %v923 = vld [vmem:[#allocation8 + $0x30] sm:$0xff]
      %v924 = vld [vmem:[#allocation8 + $0x38] sm:$0xff]
      %v925 = vld [vmem:[#allocation8 + $0x40] sm:$0xff]
      %v926 = vld [vmem:[#allocation8 + $0x48] sm:$0xff]
      %v927 = vld [vmem:[#allocation8 + $0x50] sm:$0xff]
      %v928 = vld [vmem:[#allocation8 + $0x58] sm:$0xff]
      %v929 = vld [vmem:[#allocation8 + $0x60] sm:$0xff]
      %v930 = vld [vmem:[#allocation8 + $0x68] sm:$0xff]
      %v931 = vld [vmem:[#allocation8 + $0x70] sm:$0xff]
      %v932 = vld [vmem:[#allocation8 + $0x78] sm:$0xff]
      %v933 = vmul.f32 %v854, %v917
      %v934 = vmul.f32 %v856, %v918
      %v935 = vmul.f32 %v858, %v919
      %v936 = vmul.f32 %v860, %v920
      %v937 = vmul.f32 %v862, %v921
      %v938 = vmul.f32 %v864, %v922
      %v939 = vmul.f32 %v866, %v923
      %v940 = vmul.f32 %v868, %v924
      %v941 = vmul.f32 %v870, %v925
      %v942 = vmul.f32 %v872, %v926
      %v943 = vmul.f32 %v874, %v927
      %v944 = vmul.f32 %v876, %v928
      %v945 = vmul.f32 %v878, %v929
      %v946 = vmul.f32 %v880, %v930
      %v947 = vmul.f32 %v882, %v931
      %v948 = vmul.f32 %v884, %v932
      %949 = vst [vmem:[#allocation14] sm:$0xff] %v933
      %950 = vst [vmem:[#allocation14 + $0x8] sm:$0xff] %v934
      %951 = vst [vmem:[#allocation14 + $0x10] sm:$0xff] %v935
      %952 = vst [vmem:[#allocation14 + $0x18] sm:$0xff] %v936
      %953 = vst [vmem:[#allocation14 + $0x20] sm:$0xff] %v937
      %954 = vst [vmem:[#allocation14 + $0x28] sm:$0xff] %v938
      %955 = vst [vmem:[#allocation14 + $0x30] sm:$0xff] %v939
      %956 = vst [vmem:[#allocation14 + $0x38] sm:$0xff] %v940
      %957 = vst [vmem:[#allocation14 + $0x40] sm:$0xff] %v941
      %958 = vst [vmem:[#allocation14 + $0x48] sm:$0xff] %v942
      %959 = vst [vmem:[#allocation14 + $0x50] sm:$0xff] %v943
      %960 = vst [vmem:[#allocation14 + $0x58] sm:$0xff] %v944
      %961 = vst [vmem:[#allocation14 + $0x60] sm:$0xff] %v945
      %962 = vst [vmem:[#allocation14 + $0x68] sm:$0xff] %v946
      %963 = vst [vmem:[#allocation14 + $0x70] sm:$0xff] %v947
      %964 = vst [vmem:[#allocation14 + $0x78] sm:$0xff] %v948
    $region45: #{tpu_custom_call.1} parent=1 // pred_fallthru
      _
    // Predicated region
    $region46: #{tpu_custom_call.1} parent=1 // pred_check
      _
    $region47: #{tpu_custom_call.1} parent=1 // pred_check_branch
      %966 = sbr.rel (0) target = $region49
    $region48: #{tpu_custom_call.1} parent=1 // pred_region
      %s968 = ssub.s32 2048, 2048
      %969 = vsyncadd [#allocation5], %s968
      %s970 = sshll.u32 [#allocation11], 4
      %s971 = int_to_ptr.vmem [resolvable:$true] %s970
      %976 = dma.vmem_to_hbm [thread:$0]  %s971, 2048, %s5, [#allocation5], 128, 128, 8
    $region49: #{tpu_custom_call.1} parent=1 // pred_fallthru
      _
    // Predicated region
    $region50: #{tpu_custom_call.1} parent=1 // pred_check
      _
    $region51: #{tpu_custom_call.1} parent=1 // pred_check_branch
      %978 = sbr.rel (0) target = $region53
    $region52: #{tpu_custom_call.1} parent=1 // pred_region
      %s980 = ssub.s32 2048, 2048
      %981 = vsyncadd [#allocation13], %s980
      %s982 = sshll.u32 [#allocation12], 4
      %s983 = int_to_ptr.vmem [resolvable:$true] %s982
      %988 = dma.vmem_to_hbm [thread:$0]  %s983, 2048, %s6, [#allocation13], 128, 128, 8
    $region53: #{tpu_custom_call.1} parent=1 // pred_fallthru
      _
    // Predicated region
    $region54: #{tpu_custom_call.1} parent=1 // pred_check
      _
    $region55: #{tpu_custom_call.1} parent=1 // pred_check_branch
      %990 = sbr.rel (0) target = $region57
    $region56: #{tpu_custom_call.1} parent=1 // pred_region
      %s992 = ssub.s32 2048, 2048
      %993 = vsyncadd [#allocation13], %s992
      %s994 = sshll.u32 [#allocation14], 4
      %s995 = int_to_ptr.vmem [resolvable:$true] %s994
      %1000 = dma.vmem_to_hbm [thread:$0]  %s995, 2048, %s7, [#allocation13], 128, 128, 8
    $region57: #{tpu_custom_call.1} parent=1 // pred_fallthru
      _
    // Predicated region
    $region58: #{tpu_custom_call.1} parent=1 // pred_check
      _
    $region59: #{tpu_custom_call.1} parent=1 // pred_check_branch
      %1002 = sbr.rel (0) target = $region61
    $region60: #{tpu_custom_call.1} parent=1 // pred_region
      %1003 = dma.done [#allocation5], 2048
    $region61: #{tpu_custom_call.1} parent=1 // pred_fallthru
      _
    // Predicated region
    $region62: #{tpu_custom_call.1} parent=1 // pred_check
      _
    $region63: #{tpu_custom_call.1} parent=1 // pred_check_branch
      %1005 = sbr.rel (0) target = $region65
    $region64: #{tpu_custom_call.1} parent=1 // pred_region
      %1006 = dma.done [#allocation13], 2048
    $region65: #{tpu_custom_call.1} parent=1 // pred_fallthru
      _
    // Predicated region
    $region66: #{tpu_custom_call.1} parent=1 // pred_check
      _
    $region67: #{tpu_custom_call.1} parent=1 // pred_check_branch
      %1008 = sbr.rel (0) target = $region69
    $region68: #{tpu_custom_call.1} parent=1 // pred_region
      %1009 = dma.done [#allocation13], 2048
    $region69: #{tpu_custom_call.1} parent=1 // pred_fallthru
      _
    %1010 = vsyncpa [#allocation4], 1
    %1011 = vsyncpa [#allocation7], 1
    %1012 = vsyncpa [#allocation10], 1
    %1013 = vsyncpa [#allocation5], 1
    %1014 = vsyncpa [#allocation13], 1

</llo_original>
